<compile_context>
chip_gen: v5e
topology: v5e:2x2
jax: 0.10.0
libtpu: 0.0.40
codegen_flags: <defaults>
</compile_context>

<pallas_src>
import jax
import jax.numpy as jnp
from jax.experimental import pallas as pl
from jax.experimental.pallas import tpu as pltpu

N_FEATURES = 3          # Pendulum-v1 observation dim
HIDDEN = 30
ACTION_BOUND = 2.0      # Pendulum action space is [-2, 2]

# Packed parameter buffer layout (rows of a (7, HIDDEN) f32 array):
#   rows 0..2 : fc1 weight, stored [in, out]          (3, 30)
#   row  3    : fc1 bias (activated by the constant-1 column of the step buf)
#   row  4    : mu head weight, transposed            (30,)
#   row  5    : sigma head weight, transposed         (30,)
#   row  6    : lane 0 = mu bias, lane 1 = sigma bias, rest zero
N_PARAM_ROWS = 7
# Per-step buffer layout (columns of a (B, 5) f32 array):
#   cols 0..2 : observation, col 3 : 1.0 (bias column), col 4 : eps ~ N(0,1)
N_STEP_COLS = N_FEATURES + 2


def actor_kernel(step_ref, params_ref, out_ref):
    step = step_ref[...]          # (B, 5)
    params = params_ref[...]      # (7, 30)

    # fc1 + relu on the VPU: 4 broadcast FMAs (obs cols + constant-1 bias col).
    h = step[:, 0:1] * params[0:1, :]
    for k in range(1, N_FEATURES + 1):
        h = h + step[:, k:k + 1] * params[k:k + 1, :]
    h = jnp.maximum(h, 0.0)                                    # (B, 30)

    # Heads off the MXU: VPU elementwise mul + XLU cross-lane reduce per head.
    mu_pre = jnp.sum(h * params[4:5, :], axis=-1, keepdims=True) \
        + params[6:7, 0:1]                                     # (B, 1)
    sig_pre = jnp.sum(h * params[5:6, :], axis=-1, keepdims=True) \
        + params[6:7, 1:2]                                     # (B, 1)

    mu = jnp.tanh(mu_pre) * ACTION_BOUND                       # torch.squeeze(mu*2)
    sigma = jax.nn.softplus(sig_pre) + 0.1                     # torch.squeeze(sigma+0.1)

    # Fused Normal(mu, sigma).sample() + clamp via pre-drawn eps ~ N(0,1).
    eps = step[:, N_FEATURES + 1:N_FEATURES + 2]               # (B, 1)
    action = jnp.clip(mu + sigma * eps, -ACTION_BOUND, ACTION_BOUND)

    # Direct column stores into the single (B, 3) output tile (no lane concat).
    out_ref[:, 0:1] = mu
    out_ref[:, 1:2] = sigma
    out_ref[:, 2:3] = action


def actor_apply(x, param_buf, eps):
    """Run the fused Pallas kernel. Returns (mu, sigma, action), each (B,)."""
    B = x.shape[0]
    ones = jnp.ones((B, 1), jnp.float32)
    step = jnp.concatenate(
        [x.astype(jnp.float32), ones, eps.astype(jnp.float32)], axis=1)  # (B, 5)

    vmem_full = lambda shape: pl.BlockSpec(
        shape, lambda: (0,) * len(shape), memory_space=pltpu.MemorySpace.VMEM)

    cost = pl.CostEstimate(
        flops=2 * B * ((N_FEATURES + 1) * HIDDEN + HIDDEN * 2),
        transcendentals=3 * B,  # tanh + softplus(exp/log)
        bytes_accessed=4 * (step.size + param_buf.size + B * 3),
    )

    out = pl.pallas_call(
        actor_kernel,
        out_shape=jax.ShapeDtypeStruct((B, 3), jnp.float32),
        grid=(),
        in_specs=[
            vmem_full(step.shape),        # per-step packed [obs | 1 | eps]
            vmem_full(param_buf.shape),   # packed constant parameters
        ],
        out_specs=vmem_full((B, 3)),
        cost_estimate=cost,
    )(step, param_buf)

    mu = out[:, 0]
    sigma = out[:, 1]
    action = out[:, 2]
    return mu, sigma, action


def actor_forward(x, param_buf, sample_key):
    """Mimics Actor.forward: returns (action, (mu, sigma))."""
    # TODO(synk): torch.distributions.Normal has no kernel analogue; sampling
    # is realized as mu + sigma * eps with eps ~ N(0,1), fused in the kernel.
    eps = jax.random.normal(sample_key, (x.shape[0], 1), dtype=jnp.float32)
    mu, sigma, action = actor_apply(x, param_buf, eps)
    return action, (mu, sigma)


def init_params(key):
    """Build the packed (7, 30) parameter buffer (weights ~ N(0, 0.1))."""
    k1, k2, k3, k4, k5, k6 = jax.random.split(key, 6)
    w1 = 0.1 * jax.random.normal(k1, (N_FEATURES, HIDDEN), jnp.float32)
    b1 = 0.01 * jax.random.normal(k2, (HIDDEN,), jnp.float32)
    wmu = 0.1 * jax.random.normal(k3, (HIDDEN,), jnp.float32)
    bmu = 0.01 * jax.random.normal(k4, (), jnp.float32)
    wsig = 0.1 * jax.random.normal(k5, (HIDDEN,), jnp.float32)
    bsig = 0.01 * jax.random.normal(k6, (), jnp.float32)
    bias_row = jnp.zeros((HIDDEN,), jnp.float32).at[0].set(bmu).at[1].set(bsig)
    param_buf = jnp.concatenate(
        [w1, b1[None, :], wmu[None, :], wsig[None, :], bias_row[None, :]], axis=0)
    assert param_buf.shape == (N_PARAM_ROWS, HIDDEN)
    return param_buf


if __name__ == "__main__":
    key = jax.random.PRNGKey(0)
    pkey, xkey, skey = jax.random.split(key, 3)

    B = 8
    param_buf = init_params(pkey)
    x = jax.random.normal(xkey, (B, N_FEATURES), jnp.float32)
    eps = jax.random.normal(skey, (B, 1), jnp.float32)

    mu, sigma, action = actor_apply(x, param_buf, eps)
    jax.block_until_ready((mu, sigma, action))

    # sanity checks vs. a pure-JAX reference (deterministic given eps)
    w1 = param_buf[0:N_FEATURES, :]
    b1 = param_buf[N_FEATURES, :]
    wmu = param_buf[4, :]
    wsig = param_buf[5, :]
    bmu = param_buf[6, 0]
    bsig = param_buf[6, 1]
    h_ref = jnp.maximum(x @ w1 + b1[None, :], 0.0)
    mu_ref = jnp.tanh(h_ref @ wmu + bmu) * ACTION_BOUND
    sig_ref = jax.nn.softplus(h_ref @ wsig + bsig) + 0.1
    act_ref = jnp.clip(mu_ref + sig_ref * eps[:, 0], -ACTION_BOUND, ACTION_BOUND)
    assert jnp.allclose(mu, mu_ref, atol=1e-5)
    assert jnp.allclose(sigma, sig_ref, atol=1e-5)
    assert jnp.allclose(action, act_ref, atol=1e-5)
    assert jnp.all(action <= ACTION_BOUND) and jnp.all(action >= -ACTION_BOUND)

    # exercise the forward wrapper (eps drawn from skey is identical to above)
    act2, (mu2, sig2) = actor_forward(x, param_buf, skey)
    jax.block_until_ready((act2, mu2, sig2))
    assert jnp.allclose(mu2, mu_ref, atol=1e-5)
    assert jnp.allclose(sig2, sig_ref, atol=1e-5)
    assert jnp.allclose(act2, act_ref, atol=1e-5)

    print("KERNEL_OK")
</pallas_src>

<mosaic_0001>
module attributes {stable_mosaic.version = 11 : i64} {
  func.func @actor_kernel(%arg0: memref<8x5xf32, #tpu.memory_space<vmem>>, %arg1: memref<7x30xf32, #tpu.memory_space<vmem>>, %arg2: memref<8x3xf32, #tpu.memory_space<vmem>>) attributes {dimension_semantics = [], scalar_prefetch = 0 : i64, scratch_operands = 0 : i64, tpu.core_type = #tpu.core_type<tc>} {
    %c0 = arith.constant 0 : index
    %c0_0 = arith.constant 0 : index
    %0 = vector.load %arg0[%c0, %c0_0] : memref<8x5xf32, #tpu.memory_space<vmem>>, vector<8x5xf32>
    %c0_1 = arith.constant 0 : index
    %c0_2 = arith.constant 0 : index
    %1 = vector.load %arg1[%c0_1, %c0_2] : memref<7x30xf32, #tpu.memory_space<vmem>>, vector<7x30xf32>
    %2 = vector.extract_strided_slice %0 {offsets = [0, 0], sizes = [8, 1], strides = [1, 1]} : vector<8x5xf32> to vector<8x1xf32>
    %3 = vector.extract_strided_slice %1 {offsets = [0, 0], sizes = [1, 30], strides = [1, 1]} : vector<7x30xf32> to vector<1x30xf32>
    %4 = vector.broadcast %2 : vector<8x1xf32> to vector<8x30xf32>
    %5 = vector.broadcast %3 : vector<1x30xf32> to vector<8x30xf32>
    %6 = arith.mulf %4, %5 : vector<8x30xf32>
    %7 = vector.extract_strided_slice %0 {offsets = [0, 1], sizes = [8, 1], strides = [1, 1]} : vector<8x5xf32> to vector<8x1xf32>
    %8 = vector.extract_strided_slice %1 {offsets = [1, 0], sizes = [1, 30], strides = [1, 1]} : vector<7x30xf32> to vector<1x30xf32>
    %9 = vector.broadcast %7 : vector<8x1xf32> to vector<8x30xf32>
    %10 = vector.broadcast %8 : vector<1x30xf32> to vector<8x30xf32>
    %11 = arith.mulf %9, %10 : vector<8x30xf32>
    %12 = arith.addf %6, %11 : vector<8x30xf32>
    %13 = vector.extract_strided_slice %0 {offsets = [0, 2], sizes = [8, 1], strides = [1, 1]} : vector<8x5xf32> to vector<8x1xf32>
    %14 = vector.extract_strided_slice %1 {offsets = [2, 0], sizes = [1, 30], strides = [1, 1]} : vector<7x30xf32> to vector<1x30xf32>
    %15 = vector.broadcast %13 : vector<8x1xf32> to vector<8x30xf32>
    %16 = vector.broadcast %14 : vector<1x30xf32> to vector<8x30xf32>
    %17 = arith.mulf %15, %16 : vector<8x30xf32>
    %18 = arith.addf %12, %17 : vector<8x30xf32>
    %19 = vector.extract_strided_slice %0 {offsets = [0, 3], sizes = [8, 1], strides = [1, 1]} : vector<8x5xf32> to vector<8x1xf32>
    %20 = vector.extract_strided_slice %1 {offsets = [3, 0], sizes = [1, 30], strides = [1, 1]} : vector<7x30xf32> to vector<1x30xf32>
    %21 = vector.broadcast %19 : vector<8x1xf32> to vector<8x30xf32>
    %22 = vector.broadcast %20 : vector<1x30xf32> to vector<8x30xf32>
    %23 = arith.mulf %21, %22 : vector<8x30xf32>
    %24 = arith.addf %18, %23 : vector<8x30xf32>
    %cst = arith.constant 0.000000e+00 : f32
    %25 = vector.broadcast %cst : f32 to vector<8x30xf32>
    %26 = arith.maximumf %24, %25 : vector<8x30xf32>
    %27 = vector.extract_strided_slice %1 {offsets = [4, 0], sizes = [1, 30], strides = [1, 1]} : vector<7x30xf32> to vector<1x30xf32>
    %28 = vector.broadcast %27 : vector<1x30xf32> to vector<8x30xf32>
    %29 = arith.mulf %26, %28 : vector<8x30xf32>
    %cst_3 = arith.constant dense<0.000000e+00> : vector<8xf32>
    %30 = vector.multi_reduction <add>, %29, %cst_3 [1] : vector<8x30xf32> to vector<8xf32>
    %31 = vector.shape_cast %30 : vector<8xf32> to vector<8x1xf32>
    %32 = vector.extract_strided_slice %1 {offsets = [6, 0], sizes = [1, 1], strides = [1, 1]} : vector<7x30xf32> to vector<1x1xf32>
    %33 = vector.broadcast %32 : vector<1x1xf32> to vector<8x1xf32>
    %34 = arith.addf %31, %33 : vector<8x1xf32>
    %35 = vector.extract_strided_slice %1 {offsets = [5, 0], sizes = [1, 30], strides = [1, 1]} : vector<7x30xf32> to vector<1x30xf32>
    %36 = vector.broadcast %35 : vector<1x30xf32> to vector<8x30xf32>
    %37 = arith.mulf %26, %36 : vector<8x30xf32>
    %cst_4 = arith.constant dense<0.000000e+00> : vector<8xf32>
    %38 = vector.multi_reduction <add>, %37, %cst_4 [1] : vector<8x30xf32> to vector<8xf32>
    %39 = vector.shape_cast %38 : vector<8xf32> to vector<8x1xf32>
    %40 = vector.extract_strided_slice %1 {offsets = [6, 1], sizes = [1, 1], strides = [1, 1]} : vector<7x30xf32> to vector<1x1xf32>
    %41 = vector.broadcast %40 : vector<1x1xf32> to vector<8x1xf32>
    %42 = arith.addf %39, %41 : vector<8x1xf32>
    %43 = math.tanh %34 : vector<8x1xf32>
    %cst_5 = arith.constant 2.000000e+00 : f32
    %44 = vector.broadcast %cst_5 : f32 to vector<8x1xf32>
    %45 = arith.mulf %43, %44 : vector<8x1xf32>
    %cst_6 = arith.constant 0.000000e+00 : f32
    %46 = vector.broadcast %cst_6 : f32 to vector<8x1xf32>
    %47 = arith.maximumf %42, %46 : vector<8x1xf32>
    %48 = vector.broadcast %cst_6 : f32 to vector<8x1xf32>
    %49 = arith.subf %42, %48 : vector<8x1xf32>
    %50 = arith.cmpf one, %49, %49 : vector<8x1xf32>
    %51 = vector.broadcast %cst_6 : f32 to vector<8x1xf32>
    %52 = arith.addf %42, %51 : vector<8x1xf32>
    %53 = math.absf %49 : vector<8x1xf32>
    %cst_7 = arith.constant 0.000000e+00 : f32
    %54 = vector.broadcast %cst_7 : f32 to vector<8x1xf32>
    %55 = arith.subf %54, %53 : vector<8x1xf32>
    %56 = math.exp %55 : vector<8x1xf32>
    %57 = math.log1p %56 : vector<8x1xf32>
    %58 = arith.addf %47, %57 : vector<8x1xf32>
    %59 = arith.select %50, %52, %58 : vector<8x1xi1>, vector<8x1xf32>
    %cst_8 = arith.constant 1.000000e-01 : f32
    %60 = vector.broadcast %cst_8 : f32 to vector<8x1xf32>
    %61 = arith.addf %59, %60 : vector<8x1xf32>
    %62 = vector.extract_strided_slice %0 {offsets = [0, 4], sizes = [8, 1], strides = [1, 1]} : vector<8x5xf32> to vector<8x1xf32>
    %63 = arith.mulf %61, %62 : vector<8x1xf32>
    %64 = arith.addf %45, %63 : vector<8x1xf32>
    %cst_9 = arith.constant -2.000000e+00 : f32
    %cst_10 = arith.constant 2.000000e+00 : f32
    %65 = vector.broadcast %cst_9 : f32 to vector<8x1xf32>
    %66 = arith.maximumf %65, %64 : vector<8x1xf32>
    %67 = vector.broadcast %cst_10 : f32 to vector<8x1xf32>
    %68 = arith.minimumf %67, %66 : vector<8x1xf32>
    %c0_11 = arith.constant 0 : index
    %c0_12 = arith.constant 0 : index
    %69 = vector.load %arg2[%c0_11, %c0_12] : memref<8x3xf32, #tpu.memory_space<vmem>>, vector<8x1xf32>
    tpu.vector_store %arg2[%c0_11, %c0_12], %45 {strides = array<i32>} : memref<8x3xf32, #tpu.memory_space<vmem>>, vector<8x1xf32>,
    %c0_13 = arith.constant 0 : index
    %c1 = arith.constant 1 : index
    %70 = vector.load %arg2[%c0_13, %c1] : memref<8x3xf32, #tpu.memory_space<vmem>>, vector<8x1xf32>
    tpu.vector_store %arg2[%c0_13, %c1], %61 {strides = array<i32>} : memref<8x3xf32, #tpu.memory_space<vmem>>, vector<8x1xf32>,
    %c0_14 = arith.constant 0 : index
    %c2 = arith.constant 2 : index
    %71 = vector.load %arg2[%c0_14, %c2] : memref<8x3xf32, #tpu.memory_space<vmem>>, vector<8x1xf32>
    tpu.vector_store %arg2[%c0_14, %c2], %68 {strides = array<i32>} : memref<8x3xf32, #tpu.memory_space<vmem>>, vector<8x1xf32>,
    return
  }
}

</mosaic_0001>

<llo_original>
// kernel: tpu_custom_call.1
$region0: #{tpu_custom_call.1}
  #allocation0 [shape = 'u32[]', space=smem, size = 0x4, offset = 0x4, fixed_abs, tag = 'smem constant byte address 0x4 - core index']
  #allocation1 [shape = 'u32[72,128]{1,0:T(1,128)}', space=vmem, size = 0x9000, scoped, tag = 'internal scratch']
  %s0 = inlined_call_operand.hbm [shape: f32[8,5], index: 0, kind: input, shape index: {}]
  %s1 = inlined_call_operand.hbm [shape: f32[7,30], index: 1, kind: input, shape index: {}]
  %s2 = inlined_call_operand.vmem [shape: f32[8,3], index: 2, kind: output, shape index: {}]
  %s3 = sld [smem:[#allocation0]]
  $region26: #{tpu_custom_call.1} parent=0
    _
  %s5 = ssub.s32 1, %s3
  %s6 = scalar_select 0, %s5, %s3
  $region1: #{tpu_custom_call.1} parent=0
    #allocation2 [shape = 'u8[4096]{0}', space=vmem, size = 0x1000, scoped, tag = 'input window, operand 0, single buffered']
    #allocation3 [shape = 's32[1]{0}', space=sflag, size = 0x4, scoped, tag = 'scoped memory for tpu_custom_call.1']
    #allocation4 [shape = 'u8[4096]{0}', space=vmem, size = 0x1000, scoped, tag = 'input window, operand 1, single buffered']
    #allocation5 [shape = 's32[1]{0}', space=sflag, size = 0x4, scoped, tag = 'scoped memory for tpu_custom_call.1']
    %7 = vsyncpa [#allocation3], 0
    %8 = vsyncpa [#allocation5], 0
    // Predicated region
    $region2: #{tpu_custom_call.1} parent=1 // pred_check
      _
    $region3: #{tpu_custom_call.1} parent=1 // pred_check_branch
      %10 = sbr.rel (0) target = $region5
    $region4: #{tpu_custom_call.1} parent=1 // pred_region
      %12 = vsyncadd [#allocation3], 0
      %s14 = sshll.u32 %s0, 4
      %s15 = int_to_ptr.hbm [resolvable:$true] %s14
      %s16 = sshll.u32 [#allocation2], 4
      %s17 = int_to_ptr.vmem [resolvable:$true] %s16
      %19 = dma.hbm_to_vmem [thread:$0]  %s15, 128, %s17, [#allocation3]
    $region5: #{tpu_custom_call.1} parent=1 // pred_fallthru
      _
    // Predicated region
    $region6: #{tpu_custom_call.1} parent=1 // pred_check
      _
    $region7: #{tpu_custom_call.1} parent=1 // pred_check_branch
      %21 = sbr.rel (0) target = $region9
    $region8: #{tpu_custom_call.1} parent=1 // pred_region
      %23 = vsyncadd [#allocation5], 0
      %s25 = sshll.u32 %s1, 4
      %s26 = int_to_ptr.hbm [resolvable:$true] %s25
      %s27 = sshll.u32 [#allocation4], 4
      %s28 = int_to_ptr.vmem [resolvable:$true] %s27
      %30 = dma.hbm_to_vmem [thread:$0]  %s26, 128, %s28, [#allocation5]
    $region9: #{tpu_custom_call.1} parent=1 // pred_fallthru
      _
    // Predicated region
    $region10: #{tpu_custom_call.1} parent=1 // pred_check
      _
    $region11: #{tpu_custom_call.1} parent=1 // pred_check_branch
      %32 = sbr.rel (0) target = $region13
    $region12: #{tpu_custom_call.1} parent=1 // pred_region
      %34 = dma.done [#allocation3], 128
    $region13: #{tpu_custom_call.1} parent=1 // pred_fallthru
      _
    // Predicated region
    $region14: #{tpu_custom_call.1} parent=1 // pred_check
      _
    $region15: #{tpu_custom_call.1} parent=1 // pred_check_branch
      %36 = sbr.rel (0) target = $region17
    $region16: #{tpu_custom_call.1} parent=1 // pred_region
      %38 = dma.done [#allocation5], 128
    $region17: #{tpu_custom_call.1} parent=1 // pred_fallthru
      _
    %v39 = vld [vmem:[#allocation2] sm:$0xff]
    %v40 = vld [vmem:[#allocation4] sm:$0x7f]
    %42 = vset.pattern.permute.xlu0 0
    %43 = vperm.xlu0 %42, %v39
    %v44 = vpop.permute.xlu0 %43
    %v46 = vperm.slane %v40, 0
    %v47 = vmul.f32 %v44, %v46
    %48 = vset.pattern.permute.xlu0 1
    %49 = vperm.xlu0 %48, %v39
    %v50 = vpop.permute.xlu0 %49
    %v52 = vperm.slane %v40, 1
    %v53 = vmul.f32 %v50, %v52
    %v54 = vadd.f32 %v47, %v53
    %55 = vset.pattern.permute.xlu0 2
    %56 = vperm.xlu0 %55, %v39
    %v57 = vpop.permute.xlu0 %56
    %v59 = vperm.slane %v40, 2
    %v60 = vmul.f32 %v57, %v59
    %v61 = vadd.f32 %v54, %v60
    %62 = vset.pattern.permute.xlu0 3
    %63 = vperm.xlu0 %62, %v39
    %v64 = vpop.permute.xlu0 %63
    %v66 = vperm.slane %v40, 3
    %v67 = vmul.f32 %v64, %v66
    %v68 = vadd.f32 %v61, %v67
    %v69 = vmax.f32 %v68, 0.0
    %v70 = vperm.slane %v40, 4
    %v71 = vmul.f32 %v69, %v70
    %vm72 = vcmask 244736
    %v73 = vsel %vm72, %v71, 0.0
    %74 = vadd.xlane.f32.xlu0 %v73
    %v75 = vpop.xlane.xlu0 %74
    %v76 = vperm.slane %v40, 6
    %v77 = vadd.f32 %v75, %v76
    %v78 = vperm.slane %v40, 5
    %v79 = vmul.f32 %v69, %v78
    %v80 = vsel %vm72, %v79, 0.0
    %81 = vadd.xlane.f32.xlu0 %v80
    %v82 = vpop.xlane.xlu0 %81
    %v83 = vadd.f32 %v82, %v76
    %v84 = vtanh.pop %v77
    %v85 = vmul.f32 %v84, 2.0
    %v86 = vmax.f32 %v83, 0.0
    %vm87 = vcmp.ne.f32.partialorder %v83, %v83
    %v88 = vadd.f32 %v83, 0.0
    %v89 = vand.u32 2147483647, %v83
    %v90 = vsub.f32 0.0, %v89
    %v91 = vmul.f32 %v90, 1.442695
    %v92 = vpow.pop %v91
    %v93 = vadd.f32 %v92, 1.0
    %v94 = vlog2.pop %v93
    %v95 = vmul.f32 %v94, 0.6931472
    %v96 = vmul.f32 -0.5, %v92
    %v97 = vadd.f32 %v96, 1.0
    %v98 = vmul.f32 %v97, %v92
    %v99 = vand.u32 2147483647, %v92
    %vm100 = vcmp.lt.f32.partialorder %v99, 0.0004427343
    %v101 = vsel %vm100, %v98, %v95
    %v102 = vadd.f32 %v86, %v101
    %v103 = vsel %vm87, %v88, %v102
    %v104 = vadd.f32 %v103, 0.1
    %105 = vrot.lane.b32.xlu0 %v39, 125
    %v106 = vpop.permute.xlu0 %105
    %v108 = vmul.f32 %v104, %v106
    %110 = vrot.lane.b32.xlu0 %v108, 127
    %v111 = vpop.permute.xlu0 %110
    %v113 = vadd.f32 %v85, %v111
    %v114 = vmax.f32 %v113, -2.0
    %v115 = vmin.f32 %v114, 2.0
    %vm116 = vcmask 7168
    %117 = vst.msk [vmem:[%s2] sm:$0xff] %vm116, %v85
    %vm118 = vcmask 15368
    %119 = vst.msk [vmem:[%s2] sm:$0xff] %vm118, %v104
    %121 = vrot.lane.b32.xlu0 %v115, 2
    %v122 = vpop.permute.xlu0 %121
    %vm124 = vcmask 23568
    %125 = vst.msk [vmem:[%s2] sm:$0xff] %vm124, %v122
    // Predicated region
    $region18: #{tpu_custom_call.1} parent=1 // pred_check
      _
    $region19: #{tpu_custom_call.1} parent=1 // pred_check_branch
      %127 = sbr.rel (0) target = $region21
    $region20: #{tpu_custom_call.1} parent=1 // pred_region
      _
    $region21: #{tpu_custom_call.1} parent=1 // pred_fallthru
      _
    // Predicated region
    $region22: #{tpu_custom_call.1} parent=1 // pred_check
      _
    $region23: #{tpu_custom_call.1} parent=1 // pred_check_branch
      %129 = sbr.rel (0) target = $region25
    $region24: #{tpu_custom_call.1} parent=1 // pred_region
      _
    $region25: #{tpu_custom_call.1} parent=1 // pred_fallthru
      _
    %130 = vsyncpa [#allocation3], 1
    %131 = vsyncpa [#allocation5], 1

</llo_original>
